<compile_context>
chip_gen: v6e
topology: v6e:2x2x1
jax: 0.10.0
libtpu: 0.0.40
codegen_flags: <defaults>
</compile_context>

<pallas_src>
import jax
import jax.numpy as jnp
from jax.experimental import pallas as pl
from jax.experimental.pallas import tpu as pltpu


def _torgb_kernel(w_ref, x_ref, res_ref, o_ref):
    # w_ref   : (B*O, B*I)  block-diagonal modulated 1x1 conv weight (resident)
    # x_ref   : (B*I, T)    streamed activation tile (T lane-dense)
    # res_ref : (B*O, T)    streamed residual tile
    # o_ref   : (B*O, T)    output tile
    o_ref[...] = (
        jnp.dot(w_ref[...], x_ref[...], preferred_element_type=jnp.float32)
        + res_ref[...]
    ).astype(o_ref.dtype)


def _pick_hw_tile(HW, BI, BO, itemsize=4, budget_bytes=24 << 20):
    """Lane-dense (multiple-of-128) tile size T for the HW axis.

    Targets the 512-1024 lane sweet spot for HBM-bound streaming, keeps the
    double-buffered (x + res + out) working set under budget_bytes, and keeps
    the grid deep enough (>=2, prefer >=4 steps) to pipeline DMA and to feed
    both v7x TensorCores.  Ragged last tiles are fine (grid uses pl.cdiv).
    """
    if HW <= 256:
        # Tiny images: split in two lane-dense blocks when possible so a v7x
        # megacore still has work; otherwise take the full extent as one block.
        return 128 if HW % 256 == 0 else HW
    per_lane = (BI + 2 * BO) * itemsize * 2          # x + res + out, double-buffered
    max_t = max(128, (budget_bytes // per_lane) // 128 * 128)
    T = min(1024, max_t)
    while T > 128 and pl.cdiv(HW, T) < 4:            # keep the grid deep enough
        T -= 128
    return T


def to_rgb(x, residual, style, conv_w, style_w, style_b):
    """x: (B, I, H, W), residual: (B, O, H, W), style: (B, L). Returns (B, O, H, W)."""
    B, I, H, W = x.shape
    O = conv_w.shape[0]
    HW = H * W
    BI, BO = B * I, B * O
    itemsize = 4

    # Hoisted tiny style Linear + modulation folded into the weight (plain JAX).
    y = style @ style_w.T + style_b                              # (B, I)
    wmod = conv_w[None, :, :] * (y + 1.0)[:, None, :]            # (B, O, I)
    # Block-diagonal (B*O, B*I) so the whole batch is one matmul per grid step.
    eye = jnp.eye(B, dtype=wmod.dtype)
    wbd = (wmod[:, None, :, :] * eye[:, :, None, None])          # (B, B, O, I)
    wbd = wbd.transpose(0, 2, 1, 3).reshape(BO, BI).astype(jnp.float32)

    x2 = x.reshape(BI, HW).astype(jnp.float32)
    r2 = residual.reshape(BO, HW).astype(jnp.float32)

    T = _pick_hw_tile(HW, BI, BO, itemsize)
    grid = (pl.cdiv(HW, T),)

    # VMEM limit derived from the actual double-buffered working set + headroom.
    tile_bytes = 2 * (BI + 2 * BO) * T * itemsize                # x + res + out, 2 bufs
    resident_bytes = 2 * BO * BI * itemsize                      # wbd, 2 bufs
    vmem_limit = int((tile_bytes + resident_bytes) * 1.25) + (2 << 20)
    vmem_limit = min(max(vmem_limit, 16 << 20), 48 << 20)

    out = pl.pallas_call(
        _torgb_kernel,
        out_shape=jax.ShapeDtypeStruct((BO, HW), jnp.float32),
        grid_spec=pltpu.PrefetchScalarGridSpec(
            num_scalar_prefetch=0,
            grid=grid,
            in_specs=[
                pl.BlockSpec((BO, BI), lambda t: (0, 0)),   # block-diag weight (resident)
                pl.BlockSpec((BI, T), lambda t: (0, t)),    # x tile (streamed)
                pl.BlockSpec((BO, T), lambda t: (0, t)),    # residual tile (streamed)
            ],
            out_specs=pl.BlockSpec((BO, T), lambda t: (0, t)),
        ),
        compiler_params=pltpu.CompilerParams(
            dimension_semantics=("parallel",),
            vmem_limit_bytes=vmem_limit,
        ),
    )(wbd, x2, r2)

    return out.reshape(B, O, H, W)


if __name__ == "__main__":
    B, L, I, O, H, W = 2, 32, 8, 3, 16, 16   # latent_dim=32, ichannels=8, outchannels=3

    key = jax.random.PRNGKey(0)
    k1, k2, k3, k4, k5, k6 = jax.random.split(key, 6)

    # inputs
    x = jax.random.normal(k1, (B, I, H, W), jnp.float32)
    residual = jax.random.normal(k2, (B, O, H, W), jnp.float32)
    style = jax.random.normal(k3, (B, L), jnp.float32)

    # deterministic parameter init mirroring the module's shapes
    # ModConv2D.weight: (O, I, 1, 1) kaiming_normal_(leaky_relu) -> std = sqrt(2)/sqrt(fan_in)
    fan_in = I * 1 * 1
    conv_w = (2.0 ** 0.5) / (fan_in ** 0.5) * jax.random.normal(k4, (O, I), jnp.float32)
    # nn.Linear(latent_dim, ichannels): uniform(-1/sqrt(L), 1/sqrt(L))
    bound = 1.0 / (L ** 0.5)
    style_w = jax.random.uniform(k5, (I, L), jnp.float32, -bound, bound)
    style_b = jax.random.uniform(k6, (I,), jnp.float32, -bound, bound)

    out = jax.block_until_ready(to_rgb(x, residual, style, conv_w, style_w, style_b))

    # pure-JAX reference
    y = style @ style_w.T + style_b                        # (B, I)
    wmod = conv_w[None] * (y[:, None, :] + 1.0)            # (B, O, I)
    ref = jnp.einsum('boi,bihw->bohw', wmod, x) + residual

    assert out.shape == (B, O, H, W)
    assert out.dtype == jnp.float32
    assert jnp.allclose(out, ref, atol=1e-4, rtol=1e-4)
    print("KERNEL_OK")
</pallas_src>

<mosaic_0001>
module attributes {stable_mosaic.version = 11 : i64} {
  func.func @_torgb_kernel(%arg0: i32, %arg1: memref<6x16xf32, #tpu.memory_space<vmem>>, %arg2: memref<16x128xf32, #tpu.memory_space<vmem>>, %arg3: memref<6x128xf32, #tpu.memory_space<vmem>>, %arg4: memref<6x128xf32, #tpu.memory_space<vmem>>) attributes {dimension_semantics = [#tpu.dimension_semantics<parallel>], iteration_bounds = array<i64: 2>, scalar_prefetch = 0 : i64, scratch_operands = 0 : i64, tpu.core_type = #tpu.core_type<tc>, window_params = [{pipeline_mode = #tpu.pipeline_mode<synchronous>, transform_indices = @transform_0, window_bounds = array<i64: 6, 16>}, {transform_indices = @transform_1, window_bounds = array<i64: 16, 128>}, {transform_indices = @transform_2, window_bounds = array<i64: 6, 128>}, {transform_indices = @transform_3, window_bounds = array<i64: 6, 128>}]} {
    %c0 = arith.constant 0 : index
    %c0_0 = arith.constant 0 : index
    %0 = vector.load %arg1[%c0, %c0_0] : memref<6x16xf32, #tpu.memory_space<vmem>>, vector<6x16xf32>
    %c0_1 = arith.constant 0 : index
    %c0_2 = arith.constant 0 : index
    %1 = vector.load %arg2[%c0_1, %c0_2] : memref<16x128xf32, #tpu.memory_space<vmem>>, vector<16x128xf32>
    %cst = arith.constant dense<0.000000e+00> : vector<6x128xf32>
    %2 = tpu.matmul %0, %1, %cst {dimension_numbers = #tpu.dot_dimension_numbers<[1], [0], [0], [1], [0, 0, 1, 1], [], []>} : vector<6x16xf32>, vector<16x128xf32>, vector<6x128xf32> -> vector<6x128xf32>
    %c0_3 = arith.constant 0 : index
    %c0_4 = arith.constant 0 : index
    %3 = vector.load %arg3[%c0_3, %c0_4] : memref<6x128xf32, #tpu.memory_space<vmem>>, vector<6x128xf32>
    %4 = arith.addf %2, %3 : vector<6x128xf32>
    %c0_5 = arith.constant 0 : index
    %c0_6 = arith.constant 0 : index
    %5 = vector.load %arg4[%c0_5, %c0_6] : memref<6x128xf32, #tpu.memory_space<vmem>>, vector<6x128xf32>
    tpu.vector_store %arg4[%c0_5, %c0_6], %4 {strides = array<i32>} : memref<6x128xf32, #tpu.memory_space<vmem>>, vector<6x128xf32>,
    return
  }
  func.func @transform_0(%arg0: i32) -> (i32, i32) {
    %c0_i32 = arith.constant 0 : i32
    %c0_i32_0 = arith.constant 0 : i32
    %c0_i32_1 = arith.constant 0 : i32
    return %c0_i32, %c0_i32_0 : i32, i32
  }
  func.func @transform_1(%arg0: i32) -> (i32, i32) {
    %c0_i32 = arith.constant 0 : i32
    %c0_i32_0 = arith.constant 0 : i32
    return %c0_i32, %arg0 : i32, i32
  }
  func.func @transform_2(%arg0: i32) -> (i32, i32) {
    %c0_i32 = arith.constant 0 : i32
    %c0_i32_0 = arith.constant 0 : i32
    return %c0_i32, %arg0 : i32, i32
  }
  func.func @transform_3(%arg0: i32) -> (i32, i32) {
    %c0_i32 = arith.constant 0 : i32
    %c0_i32_0 = arith.constant 0 : i32
    return %c0_i32, %arg0 : i32, i32
  }
}

</mosaic_0001>

<llo_original>
// kernel: tpu_custom_call.1
$region0: #{tpu_custom_call.1}
  #allocation0 [shape = 'u32[]', space=smem, size = 0x4, offset = 0x4, fixed_abs, tag = 'smem constant byte address 0x4 - core index']
  #allocation1 [shape = 'u32[144,128]{1,0:T(1,128)}', space=vmem, size = 0x12000, scoped, tag = 'internal scratch']
  %s0 = inlined_call_operand.hbm [shape: f32[6,16], index: 0, kind: input, shape index: {}]
  %s1 = inlined_call_operand.hbm [shape: f32[16,256], index: 1, kind: input, shape index: {}]
  %s2 = inlined_call_operand.hbm [shape: f32[6,256], index: 2, kind: input, shape index: {}]
  %s3 = inlined_call_operand.hbm [shape: f32[6,256], index: 3, kind: output, shape index: {}]
  %s4 = sld [smem:[#allocation0]]
  $region57: #{tpu_custom_call.1} parent=0
    _
  %s6 = ssub.s32 1, %s4
  %s7 = scalar_select 0, %s6, %s4
  $region1: #{tpu_custom_call.1} parent=0
    #allocation2 [shape = 'u8[4096]{0}', space=vmem, size = 0x1000, scoped, tag = 'input window, operand 0, single buffered']
    #allocation3 [shape = 's32[2]{0}', space=sflag, size = 0x8, scoped, tag = 'scoped memory for tpu_custom_call.1']
    #allocation4 [shape = 's32[2]{0}', space=sflag, size = 0x8, scoped, tag = 'scoped memory for tpu_custom_call.1']
    #allocation5 [shape = 'u8[16384]{0}', space=vmem, size = 0x4000, scoped, tag = 'input window, operand 1']
    #allocation6 [shape = 's32[2]{0}', space=sflag, size = 0x8, scoped, tag = 'scoped memory for tpu_custom_call.1']
    #allocation7 [shape = 'u8[8192]{0}', space=vmem, size = 0x2000, scoped, tag = 'input window, operand 2']
    #allocation8 [shape = 'u8[8192]{0}', space=vmem, size = 0x2000, scoped, tag = 'output window, operand 0']
    %8 = vsyncpa [#allocation3], 0
    %9 = vsyncpa [#allocation6], 0
    %s10 = scalar_lea.sflag [#allocation6], 1
    %11 = vsyncpa %s10, 0
    %12 = vsyncpa [#allocation4], 0
    %s13 = scalar_lea.sflag [#allocation4], 1
    %14 = vsyncpa %s13, 0
    loop: start=0, step=1, limit=4
    $region2: #{tpu_custom_call.1} parent=1 // loop_pre_header
      _
    $region3: #{tpu_custom_call.1} parent=1 // loop_header
      %s16 = sphi 0, %s20
      %p17 = scmp.ge.s32.totalorder %s16, 4
      %s24 = sphi 0, %s24
      %s26 = sphi 0, %s24
      %s27 = sphi 0, %s26
      %s41 = sphi 0, %s27
      %s47 = sphi 0, %s49
      %s50 = sphi 0, %s47
      %s51 = sphi 0, %s50
      %s67 = sphi 0, %s51
      %s73 = sphi 0, %s75
      %s76 = sphi 0, %s73
      %s77 = sphi 0, %s76
      %s93 = sphi 0, %s77
      %s99 = sphi 0, %s101
      %s102 = sphi 0, %s99
      %s103 = sphi 0, %s102
      %s119 = sphi 0, %s103
    $region4: #{tpu_custom_call.1} parent=1 // loop_header_branch
      %19 = sbr.rel (%p17) target = $region8
    $region5: #{tpu_custom_call.1} parent=1 // loop_body
      %s21 = ssub.s32 %s16, 1
      %s22 = ssub.s32 %s16, 2
      %s23 = sadd.s32 %s16, 1
      %s25 = sadd.s32 %s24, 1
      %p28 = scmp.eq.s32.totalorder %s16, 1
      %p29 = scmp.ne.s32.totalorder %s24, %s26
      %p30 = scmp.eq.s32.totalorder %s16, 0
      %p31 = por %p29, %p30
      %p32 = scmp.ne.s32.totalorder %s24, %s26
      %p33 = scmp.eq.s32.totalorder %s21, 1
      %p34 = por %p32, %p33
      %p35 = scmp.ne.s32.totalorder %s26, %s27
      %p36 = scmp.eq.s32.totalorder %s21, 0
      %p37 = por %p35, %p36
      %p38 = scmp.ne.s32.totalorder %s26, %s27
      %p39 = scmp.eq.s32.totalorder %s22, 1
      %p40 = por %p38, %p39
      %p42 = scmp.ne.s32.totalorder %s27, %s41
      %p43 = scmp.eq.s32.totalorder %s22, 0
      %p44 = por %p42, %p43
      %s45 = ssub.s32 %s16, %s23
      %p46 = scmp.eq.s32.totalorder %s45, 0
      %s48 = sadd.s32 %s47, 1
      %s49 = scalar_select %p46, %s47, %s48
      %p52 = pneg %p46
      %p53 = scmp.eq.s32.totalorder %s16, 1
      %p54 = por %p52, %p53
      %p55 = scmp.ne.s32.totalorder %s47, %s50
      %p56 = scmp.eq.s32.totalorder %s16, 0
      %p57 = por %p55, %p56
      %p58 = scmp.ne.s32.totalorder %s47, %s50
      %p59 = scmp.eq.s32.totalorder %s21, 1
      %p60 = por %p58, %p59
      %p61 = scmp.ne.s32.totalorder %s50, %s51
      %p62 = scmp.eq.s32.totalorder %s21, 0
      %p63 = por %p61, %p62
      %p64 = scmp.ne.s32.totalorder %s50, %s51
      %p65 = scmp.eq.s32.totalorder %s22, 1
      %p66 = por %p64, %p65
      %p68 = scmp.ne.s32.totalorder %s51, %s67
      %p69 = scmp.eq.s32.totalorder %s22, 0
      %p70 = por %p68, %p69
      %s71 = ssub.s32 %s16, %s23
      %p72 = scmp.eq.s32.totalorder %s71, 0
      %s74 = sadd.s32 %s73, 1
      %s75 = scalar_select %p72, %s73, %s74
      %p78 = pneg %p72
      %p79 = scmp.eq.s32.totalorder %s16, 1
      %p80 = por %p78, %p79
      %p81 = scmp.ne.s32.totalorder %s73, %s76
      %p82 = scmp.eq.s32.totalorder %s16, 0
      %p83 = por %p81, %p82
      %p84 = scmp.ne.s32.totalorder %s73, %s76
      %p85 = scmp.eq.s32.totalorder %s21, 1
      %p86 = por %p84, %p85
      %p87 = scmp.ne.s32.totalorder %s76, %s77
      %p88 = scmp.eq.s32.totalorder %s21, 0
      %p89 = por %p87, %p88
      %p90 = scmp.ne.s32.totalorder %s76, %s77
      %p91 = scmp.eq.s32.totalorder %s22, 1
      %p92 = por %p90, %p91
      %p94 = scmp.ne.s32.totalorder %s77, %s93
      %p95 = scmp.eq.s32.totalorder %s22, 0
      %p96 = por %p94, %p95
      %s97 = ssub.s32 %s16, %s23
      %p98 = scmp.eq.s32.totalorder %s97, 0
      %s100 = sadd.s32 %s99, 1
      %s101 = scalar_select %p98, %s99, %s100
      %p104 = pneg %p98
      %p105 = scmp.eq.s32.totalorder %s16, 1
      %p106 = por %p104, %p105
      %p107 = scmp.ne.s32.totalorder %s99, %s102
      %p108 = scmp.eq.s32.totalorder %s16, 0
      %p109 = por %p107, %p108
      %p110 = scmp.ne.s32.totalorder %s99, %s102
      %p111 = scmp.eq.s32.totalorder %s21, 1
      %p112 = por %p110, %p111
      %p113 = scmp.ne.s32.totalorder %s102, %s103
      %p114 = scmp.eq.s32.totalorder %s21, 0
      %p115 = por %p113, %p114
      %p116 = scmp.ne.s32.totalorder %s102, %s103
      %p117 = scmp.eq.s32.totalorder %s22, 1
      %p118 = por %p116, %p117
      %p120 = scmp.ne.s32.totalorder %s103, %s119
      %p121 = scmp.eq.s32.totalorder %s22, 0
      %p122 = por %p120, %p121
      %p123 = scmp.le.s32.totalorder 1, %s16
      %p124 = scmp.lt.s32.totalorder %s16, 3
      %p125 = pnand %p123, %p124
      %p126 = pneg %p125
      // Predicated region
      $region9: #{tpu_custom_call.1} parent=5 // pred_check
        _
      $region10: #{tpu_custom_call.1} parent=5 // pred_check_branch
        %128 = sbr.rel (%p125) target = $region12
      $region11: #{tpu_custom_call.1} parent=5 // pred_region
        %s129 = ssub.s32 %s16, 1
        // Predicated region
        $region13: #{tpu_custom_call.1} parent=11 // pred_check
          %p130 = pneg %p37
        $region14: #{tpu_custom_call.1} parent=11 // pred_check_branch
          %132 = sbr.rel (%p130) target = $region16
        $region15: #{tpu_custom_call.1} parent=11 // pred_region
          %s134 = ssub.s32 128, 128
          %135 = vsyncadd [#allocation3], %s134
          %s137 = sshll.u32 [#allocation2], 4
          %s138 = int_to_ptr.vmem [resolvable:$true] %s137
          %140 = dma.hbm_to_vmem [thread:$0]  %s0, 128, %s138, [#allocation3]
        $region16: #{tpu_custom_call.1} parent=11 // pred_fallthru
          _
      $region12: #{tpu_custom_call.1} parent=5 // pred_fallthru
        _
      %p141 = scmp.lt.s32.totalorder %s16, 2
      // Predicated region
      $region17: #{tpu_custom_call.1} parent=5 // pred_check
        %p142 = pneg %p141
      $region18: #{tpu_custom_call.1} parent=5 // pred_check_branch
        %144 = sbr.rel (%p142) target = $region20
      $region19: #{tpu_custom_call.1} parent=5 // pred_region
        // Predicated region
        $region21: #{tpu_custom_call.1} parent=19 // pred_check
          %p145 = pneg %p57
        $region22: #{tpu_custom_call.1} parent=19 // pred_check_branch
          %147 = sbr.rel (%p145) target = $region24
        $region23: #{tpu_custom_call.1} parent=19 // pred_region
          %s148 = sand.u32 %s16, 1
          %s149 = scalar_lea.sflag [#allocation6], %s148
          %s150 = sand.u32 %s47, 1
          %s151 = smul.addr %s150, 16
          %s152 = scalar_lea.vmem [#allocation5], %s151
          %s154 = ssub.s32 256, 256
          %155 = vsyncadd %s149, %s154
          %s156 = smul.addr %s16, 128
          %s157 = scalar_lea.hbm %s1, %s156
          %s158 = sshll.u32 %s152, 4
          %s159 = int_to_ptr.vmem [resolvable:$true] %s158
          %164 = dma.hbm_to_vmem [thread:$0]  %s157, 256, %s159, %s149, 256, 128, 8
        $region24: #{tpu_custom_call.1} parent=19 // pred_fallthru
          _
        // Predicated region
        $region25: #{tpu_custom_call.1} parent=19 // pred_check
          %p165 = pneg %p83
        $region26: #{tpu_custom_call.1} parent=19 // pred_check_branch
          %167 = sbr.rel (%p165) target = $region28
        $region27: #{tpu_custom_call.1} parent=19 // pred_region
          %s168 = sand.u32 %s16, 1
          %s169 = scalar_lea.sflag [#allocation6], %s168
          %s170 = sand.u32 %s73, 1
          %s171 = smul.addr %s170, 8
          %s172 = scalar_lea.vmem [#allocation7], %s171
          %s174 = ssub.s32 128, 128
          %175 = vsyncadd %s169, %s174
          %s176 = smul.addr %s16, 128
          %s177 = scalar_lea.hbm %s2, %s176
          %s179 = sshll.u32 %s172, 4
          %s180 = int_to_ptr.vmem [resolvable:$true] %s179
          %182 = dma.hbm_to_vmem [thread:$0]  %s177, 128, %s180, %s169
        $region28: #{tpu_custom_call.1} parent=19 // pred_fallthru
          _
      $region20: #{tpu_custom_call.1} parent=5 // pred_fallthru
        _
      %p183 = scmp.le.s32.totalorder 1, %s16
      %p184 = scmp.lt.s32.totalorder %s16, 3
      %p185 = pnand %p183, %p184
      %p186 = pneg %p185
      // Predicated region
      $region29: #{tpu_custom_call.1} parent=5 // pred_check
        _
      $region30: #{tpu_custom_call.1} parent=5 // pred_check_branch
        %188 = sbr.rel (%p185) target = $region32
      $region31: #{tpu_custom_call.1} parent=5 // pred_region
        %s189 = ssub.s32 %s16, 1
        // Predicated region
        $region33: #{tpu_custom_call.1} parent=31 // pred_check
          %p190 = pneg %p37
        $region34: #{tpu_custom_call.1} parent=31 // pred_check_branch
          %192 = sbr.rel (%p190) target = $region36
        $region35: #{tpu_custom_call.1} parent=31 // pred_region
          %193 = dma.done [#allocation3], 128
        $region36: #{tpu_custom_call.1} parent=31 // pred_fallthru
          _
        %s194 = sand.u32 %s21, 1
        %s195 = scalar_lea.sflag [#allocation6], %s194
        %s196 = sand.u32 %s50, 1
        %s197 = smul.addr %s196, 16
        %s198 = scalar_lea.vmem [#allocation5], %s197
        // Predicated region
        $region37: #{tpu_custom_call.1} parent=31 // pred_check
          %p199 = pneg %p63
        $region38: #{tpu_custom_call.1} parent=31 // pred_check_branch
          %201 = sbr.rel (%p199) target = $region40
        $region39: #{tpu_custom_call.1} parent=31 // pred_region
          %202 = dma.done %s195, 256
        $region40: #{tpu_custom_call.1} parent=31 // pred_fallthru
          _
        %s203 = sand.u32 %s21, 1
        %s204 = scalar_lea.sflag [#allocation6], %s203
        %s205 = sand.u32 %s76, 1
        %s206 = smul.addr %s205, 8
        %s207 = scalar_lea.vmem [#allocation7], %s206
        // Predicated region
        $region41: #{tpu_custom_call.1} parent=31 // pred_check
          %p208 = pneg %p89
        $region42: #{tpu_custom_call.1} parent=31 // pred_check_branch
          %210 = sbr.rel (%p208) target = $region44
        $region43: #{tpu_custom_call.1} parent=31 // pred_region
          %211 = dma.done %s204, 128
        $region44: #{tpu_custom_call.1} parent=31 // pred_fallthru
          _
        %p212 = pneg %p37
        %p213 = pneg %p34
        %s214 = sand.u32 %s21, 1
        %s215 = scalar_lea.sflag [#allocation6], %s214
        %s216 = sand.u32 %s50, 1
        %s217 = smul.addr %s216, 16
        %s218 = scalar_lea.vmem [#allocation5], %s217
        %p219 = pneg %p63
        %p220 = pneg %p60
        %s221 = sand.u32 %s21, 1
        %s222 = scalar_lea.sflag [#allocation6], %s221
        %s223 = sand.u32 %s76, 1
        %s224 = smul.addr %s223, 8
        %s225 = scalar_lea.vmem [#allocation7], %s224
        %p226 = pneg %p89
        %p227 = pneg %p86
        %p228 = pneg %p115
        %p229 = pneg %p112
        %s230 = sand.u32 %s102, 1
        %s231 = scalar_lea.sflag [#allocation4], %s230
        %s232 = sand.u32 %s102, 1
        %s233 = smul.addr %s232, 8
        %s234 = scalar_lea.vmem [#allocation8], %s233
        %v235 = vld [vmem:[#allocation2] sm:$0x3f]
        %v236 = vld [vmem:[%s198] sm:$0xff]
        %v237 = vld [vmem:[%s198 + $0x8] sm:$0xff]
        %v238 = vld [vmem:[%s207] sm:$0x3f]
        %vm239 = vcmask 130048
        %v241 = vsel %vm239, %v235, 0
        %243 = vmatprep.subr.mxu0 0.0
        %244 = vmatpush1.msra.mxu0 0.0
        %245 = vmatprep.subr.mxu0 0.0
        %246 = vmatpush1.msra.mxu0 0.0
        %247 = vmatprep.subr.mxu0 0.0
        %248 = vmatpush1.msra.mxu0 0.0
        %249 = vmatprep.subr.mxu0 0.0
        %250 = vmatpush1.msra.mxu0 0.0
        %251 = vmatprep.subr.mxu0 0.0
        %252 = vmatpush1.msra.mxu0 0.0
        %253 = vmatprep.subr.mxu0 0.0
        %254 = vmatpush1.msra.mxu0 0.0
        %255 = vmatprep.subr.mxu0 0.0
        %256 = vmatpush1.msra.mxu0 0.0
        %257 = vmatprep.subr.mxu0 0.0
        %258 = vmatpush1.msra.mxu0 0.0
        %259 = vmatprep.subr.mxu0 0.0
        %260 = vmatpush1.msra.mxu0 0.0
        %261 = vmatprep.subr.mxu0 0.0
        %262 = vmatpush1.msra.mxu0 0.0
        %263 = vmatprep.subr.mxu0 0.0
        %264 = vmatpush1.msra.mxu0 0.0
        %265 = vmatprep.subr.mxu0 0.0
        %266 = vmatpush1.msra.mxu0 0.0
        %267 = vmatprep.subr.mxu0 0.0
        %268 = vmatpush1.msra.mxu0 0.0
        %269 = vmatprep.subr.mxu0 0.0
        %270 = vmatpush1.msra.mxu0 0.0
        %271 = vmatprep.subr.mxu0 0.0
        %272 = vmatpush1.msra.mxu0 %v237
        %273 = vmatprep.subr.mxu0 0.0
        %274 = vmatpush1.msra.mxu0 %v236
        %275 = vmatprep.subr.mxu0 0.0
        %276 = vmatpush2.msra.mxu0 0.0
        %277 = vmatprep.subr.mxu0 0.0
        %278 = vmatpush2.msra.mxu0 0.0
        %279 = vmatprep.subr.mxu0 0.0
        %280 = vmatpush2.msra.mxu0 0.0
        %281 = vmatprep.subr.mxu0 0.0
        %282 = vmatpush2.msra.mxu0 0.0
        %283 = vmatprep.subr.mxu0 0.0
        %284 = vmatpush2.msra.mxu0 0.0
        %285 = vmatprep.subr.mxu0 0.0
        %286 = vmatpush2.msra.mxu0 0.0
        %287 = vmatprep.subr.mxu0 0.0
        %288 = vmatpush2.msra.mxu0 0.0
        %289 = vmatprep.subr.mxu0 0.0
        %290 = vmatpush2.msra.mxu0 0.0
        %291 = vmatprep.subr.mxu0 0.0
        %292 = vmatpush2.msra.mxu0 0.0
        %293 = vmatprep.subr.mxu0 0.0
        %294 = vmatpush2.msra.mxu0 0.0
        %295 = vmatprep.subr.mxu0 0.0
        %296 = vmatpush2.msra.mxu0 0.0
        %297 = vmatprep.subr.mxu0 0.0
        %298 = vmatpush2.msra.mxu0 0.0
        %299 = vmatprep.subr.mxu0 0.0
        %300 = vmatpush2.msra.mxu0 0.0
        %301 = vmatprep.subr.mxu0 0.0
        %302 = vmatpush2.msra.mxu0 0.0
        %303 = vmatprep.subr.mxu0 0.0
        %304 = vmatpush2.msra.mxu0 0.0
        %305 = vmatprep.subr.mxu0 0.0
        %306 = vmatpush2.msra.mxu0 0.0
        %307 = vmatprep.mubr.f32.mxu0 0.0
        %308 = vmatmul.mubr.f32.gmra.mxu0 %v241
        %v309 = vpop.f32.mrf.mxu0
        %v310 = vadd.f32 %v238, %v309
        %v311 = vpop.f32.mrf.mxu0
        %312 = vdwg.mxu0
        %313 = vst [vmem:[%s234] sm:$0x3f] %v310
        %s314 = sand.u32 %s102, 1
        %s315 = scalar_lea.sflag [#allocation4], %s314
        %s316 = sand.u32 %s102, 1
        %s317 = smul.addr %s316, 8
        %s318 = scalar_lea.vmem [#allocation8], %s317
        // Predicated region
        $region45: #{tpu_custom_call.1} parent=31 // pred_check
          %p319 = pneg %p112
        $region46: #{tpu_custom_call.1} parent=31 // pred_check_branch
          %321 = sbr.rel (%p319) target = $region48
        $region47: #{tpu_custom_call.1} parent=31 // pred_region
          %s323 = ssub.s32 128, 128
          %324 = vsyncadd %s315, %s323
          %s325 = smul.addr %s21, 128
          %s326 = scalar_lea.hbm %s3, %s325
          %s328 = sshll.u32 %s318, 4
          %s329 = int_to_ptr.vmem [resolvable:$true] %s328
          %331 = dma.vmem_to_hbm [thread:$0]  %s329, 128, %s326, %s315
        $region48: #{tpu_custom_call.1} parent=31 // pred_fallthru
          _
      $region32: #{tpu_custom_call.1} parent=5 // pred_fallthru
        _
      %p332 = scmp.le.s32.totalorder 2, %s16
      // Predicated region
      $region49: #{tpu_custom_call.1} parent=5 // pred_check
        %p333 = pneg %p332
      $region50: #{tpu_custom_call.1} parent=5 // pred_check_branch
        %335 = sbr.rel (%p333) target = $region52
      $region51: #{tpu_custom_call.1} parent=5 // pred_region
        %s336 = ssub.s32 %s16, 2
        // Predicated region
        $region53: #{tpu_custom_call.1} parent=51 // pred_check
          %p337 = pneg %p118
        $region54: #{tpu_custom_call.1} parent=51 // pred_check_branch
          %339 = sbr.rel (%p337) target = $region56
        $region55: #{tpu_custom_call.1} parent=51 // pred_region
          %s340 = sand.u32 %s103, 1
          %s341 = scalar_lea.sflag [#allocation4], %s340
          %s342 = sand.u32 %s103, 1
          %s343 = smul.addr %s342, 8
          %s344 = scalar_lea.vmem [#allocation8], %s343
          %345 = dma.done %s341, 128
        $region56: #{tpu_custom_call.1} parent=51 // pred_fallthru
          _
      $region52: #{tpu_custom_call.1} parent=5 // pred_fallthru
        _
    $region6: #{tpu_custom_call.1} parent=1 // loop_footer
      %s20 = sadd.s32 1, %s16
    $region7: #{tpu_custom_call.1} parent=1 // loop_footer_branch
      %15 = sbr.rel target = $region3
    $region8: #{tpu_custom_call.1} parent=1 // loop_exit
      _
    %346 = vsyncpa [#allocation3], 1
    %s347 = scalar_lea.sflag [#allocation3], 1
    %348 = vsyncpa %s347, 1
    %349 = vsyncpa [#allocation6], 1
    %s350 = scalar_lea.sflag [#allocation6], 1
    %351 = vsyncpa %s350, 1
    %352 = vsyncpa [#allocation4], 1
    %s353 = scalar_lea.sflag [#allocation4], 1
    %354 = vsyncpa %s353, 1

</llo_original>
